<compile_context>
chip_gen: v5e
topology: v5e:2x2
jax: 0.10.0
libtpu: 0.0.40
codegen_flags: <defaults>
</compile_context>

<pallas_src>
import jax
import jax.numpy as jnp
from jax import lax
from jax.experimental import pallas as pl
from jax.experimental.pallas import tpu as pltpu


def _pooler_kernel(x_ref, w_ref, b_ref, o_ref):
    # x_ref: (TB, H)  token-0 activations for this batch tile
    # w_ref: (H, H)   torch Linear weight (out x in), VMEM-resident
    # b_ref: (1, H)   bias
    # o_ref: (TB, H)  pooled output tile
    y = lax.dot_general(
        x_ref[...],
        w_ref[...],
        dimension_numbers=(((1,), (1,)), ((), ())),  # contract x's H with W's "in" axis
        preferred_element_type=jnp.float32,
    )
    y = y + b_ref[...].astype(jnp.float32)
    o_ref[...] = jnp.tanh(y).astype(o_ref.dtype)


def bert_pooler(hidden_states, weight, bias, *, tb_max=256):
    """hidden_states: [B, S, H]; weight: [H, H] (torch layout out x in); bias: [H]."""
    B, S, H = hidden_states.shape
    itemsize = jnp.dtype(hidden_states.dtype).itemsize

    if H % 128 == 0:
        # Free reshape: row b of x2 is [token0 | token1 | ...]; the (TB, H)
        # block at column-block 0 is exactly token 0 — no wrapper-side gather.
        x = hidden_states.reshape(B, S * H)
    else:
        # TODO(synk): sub-128 hidden sizes would need a non-lane-dense block on
        # the folded layout; fall back to a wrapper-side slice (still correct).
        x = hidden_states[:, 0]

    # Batch tile: full B if small (full-dim block is always legal), else a
    # multiple-of-8 tile so the (8, 128) block constraint holds for any B.
    TB = B if B <= tb_max else tb_max
    grid = (pl.cdiv(B, TB),)

    # VMEM budget: double-buffered x + out tiles, weight (+ possible second
    # buffer), bias.  Keep comfortably under v7x's 64 MiB physical VMEM.
    weight_bytes = H * H * itemsize
    io_bytes = 2 * 2 * TB * H * itemsize
    vmem_limit = int(min(2 * weight_bytes + io_bytes + (4 << 20), 48 << 20))

    cost = pl.CostEstimate(
        flops=2 * B * H * H,
        transcendentals=B * H,
        bytes_accessed=(H * H + 2 * B * H + H) * itemsize,
    )

    out = pl.pallas_call(
        _pooler_kernel,
        out_shape=jax.ShapeDtypeStruct((B, H), hidden_states.dtype),
        grid_spec=pltpu.PrefetchScalarGridSpec(
            num_scalar_prefetch=0,
            grid=grid,
            in_specs=[
                pl.BlockSpec((TB, H), lambda i: (i, 0)),   # token-0 window of x
                pl.BlockSpec((H, H), lambda i: (0, 0)),    # weight: fetched once, stays resident
                pl.BlockSpec((1, H), lambda i: (0, 0)),    # bias
            ],
            out_specs=pl.BlockSpec((TB, H), lambda i: (i, 0)),
        ),
        compiler_params=pltpu.CompilerParams(
            dimension_semantics=("parallel",),
            vmem_limit_bytes=vmem_limit,
        ),
        cost_estimate=cost,
    )(x, weight, bias.reshape(1, H))
    return out


def reference_pooler(hidden_states, weight, bias):
    first = hidden_states[:, 0]
    return jnp.tanh(first @ weight.T + bias)


if __name__ == "__main__":
    key = jax.random.PRNGKey(0)

    # --- Test 1: small shapes, single grid step (TB == B) ---
    B, S, H = 2, 8, 128
    k_x, k_w, k_b, k_x2 = jax.random.split(key, 4)
    hidden_states = jax.random.normal(k_x, (B, S, H), dtype=jnp.float32)
    weight = jax.random.normal(k_w, (H, H), dtype=jnp.float32) * (1.0 / jnp.sqrt(H))
    bias = jax.random.normal(k_b, (H,), dtype=jnp.float32) * 0.02

    out = jax.block_until_ready(bert_pooler(hidden_states, weight, bias))
    ref = reference_pooler(hidden_states, weight, bias)
    assert out.shape == (B, H)
    assert jnp.allclose(out, ref, atol=5e-3, rtol=5e-3)

    # --- Test 2: exercise the pipelined batch grid (grid > 1, resident weight) ---
    B2, S2 = 24, 4
    hidden_states2 = jax.random.normal(k_x2, (B2, S2, H), dtype=jnp.float32)
    out2 = jax.block_until_ready(bert_pooler(hidden_states2, weight, bias, tb_max=8))
    ref2 = reference_pooler(hidden_states2, weight, bias)
    assert out2.shape == (B2, H)
    assert jnp.allclose(out2, ref2, atol=5e-3, rtol=5e-3)

    print("KERNEL_OK")
</pallas_src>

<mosaic_0001>
module attributes {stable_mosaic.version = 11 : i64} {
  func.func @_pooler_kernel(%arg0: i32, %arg1: memref<2x128xf32, #tpu.memory_space<vmem>>, %arg2: memref<128x128xf32, #tpu.memory_space<vmem>>, %arg3: memref<1x128xf32, #tpu.memory_space<vmem>>, %arg4: memref<2x128xf32, #tpu.memory_space<vmem>>) attributes {dimension_semantics = [#tpu.dimension_semantics<parallel>], iteration_bounds = array<i64: 1>, scalar_prefetch = 0 : i64, scratch_operands = 0 : i64, tpu.core_type = #tpu.core_type<tc>, window_params = [{transform_indices = @transform_0, window_bounds = array<i64: 2, 128>}, {pipeline_mode = #tpu.pipeline_mode<synchronous>, transform_indices = @transform_1, window_bounds = array<i64: 128, 128>}, {pipeline_mode = #tpu.pipeline_mode<synchronous>, transform_indices = @transform_2, window_bounds = array<i64: 1, 128>}, {transform_indices = @transform_3, window_bounds = array<i64: 2, 128>}]} {
    %c0 = arith.constant 0 : index
    %c0_0 = arith.constant 0 : index
    %0 = vector.load %arg1[%c0, %c0_0] : memref<2x128xf32, #tpu.memory_space<vmem>>, vector<2x128xf32>
    %c0_1 = arith.constant 0 : index
    %c0_2 = arith.constant 0 : index
    %1 = vector.load %arg2[%c0_1, %c0_2] : memref<128x128xf32, #tpu.memory_space<vmem>>, vector<128x128xf32>
    %cst = arith.constant dense<0.000000e+00> : vector<2x128xf32>
    %2 = tpu.matmul %0, %1, %cst {dimension_numbers = #tpu.dot_dimension_numbers<[1], [1], [0], [0], [0, 0, 1, 0], [], []>} : vector<2x128xf32>, vector<128x128xf32>, vector<2x128xf32> -> vector<2x128xf32>
    %c0_3 = arith.constant 0 : index
    %c0_4 = arith.constant 0 : index
    %3 = vector.load %arg3[%c0_3, %c0_4] : memref<1x128xf32, #tpu.memory_space<vmem>>, vector<1x128xf32>
    %4 = vector.broadcast %3 : vector<1x128xf32> to vector<2x128xf32>
    %5 = arith.addf %2, %4 : vector<2x128xf32>
    %6 = math.tanh %5 : vector<2x128xf32>
    %c0_5 = arith.constant 0 : index
    %c0_6 = arith.constant 0 : index
    %7 = vector.load %arg4[%c0_5, %c0_6] : memref<2x128xf32, #tpu.memory_space<vmem>>, vector<2x128xf32>
    tpu.vector_store %arg4[%c0_5, %c0_6], %6 {strides = array<i32>} : memref<2x128xf32, #tpu.memory_space<vmem>>, vector<2x128xf32>,
    return
  }
  func.func @transform_0(%arg0: i32) -> (i32, i32) {
    %c0_i32 = arith.constant 0 : i32
    %c0_i32_0 = arith.constant 0 : i32
    return %arg0, %c0_i32 : i32, i32
  }
  func.func @transform_1(%arg0: i32) -> (i32, i32) {
    %c0_i32 = arith.constant 0 : i32
    %c0_i32_0 = arith.constant 0 : i32
    %c0_i32_1 = arith.constant 0 : i32
    return %c0_i32, %c0_i32_0 : i32, i32
  }
  func.func @transform_2(%arg0: i32) -> (i32, i32) {
    %c0_i32 = arith.constant 0 : i32
    %c0_i32_0 = arith.constant 0 : i32
    %c0_i32_1 = arith.constant 0 : i32
    return %c0_i32, %c0_i32_0 : i32, i32
  }
  func.func @transform_3(%arg0: i32) -> (i32, i32) {
    %c0_i32 = arith.constant 0 : i32
    %c0_i32_0 = arith.constant 0 : i32
    return %arg0, %c0_i32 : i32, i32
  }
}

</mosaic_0001>

<llo_original>
// kernel: tpu_custom_call.1
$region0: #{tpu_custom_call.1}
  #allocation0 [shape = 'u32[]', space=smem, size = 0x4, offset = 0x4, fixed_abs, tag = 'smem constant byte address 0x4 - core index']
  #allocation1 [shape = 'u32[72,128]{1,0:T(1,128)}', space=vmem, size = 0x9000, scoped, tag = 'internal scratch']
  %s0 = inlined_call_operand.hbm [shape: f32[2,1024], index: 0, kind: input, shape index: {}]
  %s1 = inlined_call_operand.hbm [shape: f32[128,128], index: 1, kind: input, shape index: {}]
  %s2 = inlined_call_operand.vmem [shape: f32[1,128], index: 2, kind: input, shape index: {}]
  %s3 = inlined_call_operand.hbm [shape: f32[2,128], index: 3, kind: output, shape index: {}]
  %s4 = sld [smem:[#allocation0]]
  $region30: #{tpu_custom_call.1} parent=0
    _
  %s6 = ssub.s32 1, %s4
  %s7 = scalar_select 0, %s6, %s4
  $region1: #{tpu_custom_call.1} parent=0
    #allocation2 [shape = 'u8[1024]{0}', space=vmem, size = 0x400, scoped, tag = 'input window, operand 0, single buffered']
    #allocation3 [shape = 's32[1]{0}', space=sflag, size = 0x4, scoped, tag = 'scoped memory for tpu_custom_call.1']
    #allocation4 [shape = 's32[1]{0}', space=sflag, size = 0x4, scoped, tag = 'scoped memory for tpu_custom_call.1']
    #allocation5 [shape = 'u8[65536]{0}', space=vmem, size = 0x10000, scoped, tag = 'input window, operand 1, single buffered']
    #allocation6 [shape = 's32[1]{0}', space=sflag, size = 0x4, scoped, tag = 'scoped memory for tpu_custom_call.1']
    #allocation7 [shape = 'u8[1024]{0}', space=vmem, size = 0x400, scoped, tag = 'output window, operand 0, single buffered']
    %8 = vsyncpa [#allocation3], 0
    %9 = vsyncpa [#allocation6], 0
    %10 = vsyncpa [#allocation4], 0
    // Predicated region
    $region2: #{tpu_custom_call.1} parent=1 // pred_check
      _
    $region3: #{tpu_custom_call.1} parent=1 // pred_check_branch
      %12 = sbr.rel (0) target = $region5
    $region4: #{tpu_custom_call.1} parent=1 // pred_region
      %14 = vsyncadd [#allocation3], 0
      %s16 = sshll.u32 %s0, 4
      %s17 = int_to_ptr.hbm [resolvable:$true] %s16
      %s18 = sshll.u32 [#allocation2], 4
      %s19 = int_to_ptr.vmem [resolvable:$true] %s18
      %21 = dma.hbm_to_vmem [thread:$0]  %s17, 32, %s19, [#allocation3]
    $region5: #{tpu_custom_call.1} parent=1 // pred_fallthru
      _
    // Predicated region
    $region6: #{tpu_custom_call.1} parent=1 // pred_check
      _
    $region7: #{tpu_custom_call.1} parent=1 // pred_check_branch
      %23 = sbr.rel (0) target = $region9
    $region8: #{tpu_custom_call.1} parent=1 // pred_region
      %25 = vsyncadd [#allocation6], 0
      %s26 = sshll.u32 %s1, 4
      %s27 = int_to_ptr.hbm [resolvable:$true] %s26
      %s28 = sshll.u32 [#allocation5], 4
      %s29 = int_to_ptr.vmem [resolvable:$true] %s28
      %34 = dma.hbm_to_vmem [thread:$0]  %s27, 2048, %s29, [#allocation6], 128, 128, 8
    $region9: #{tpu_custom_call.1} parent=1 // pred_fallthru
      _
    // Predicated region
    $region10: #{tpu_custom_call.1} parent=1 // pred_check
      _
    $region11: #{tpu_custom_call.1} parent=1 // pred_check_branch
      %36 = sbr.rel (0) target = $region13
    $region12: #{tpu_custom_call.1} parent=1 // pred_region
      _
    $region13: #{tpu_custom_call.1} parent=1 // pred_fallthru
      _
    // Predicated region
    $region14: #{tpu_custom_call.1} parent=1 // pred_check
      _
    $region15: #{tpu_custom_call.1} parent=1 // pred_check_branch
      %38 = sbr.rel (0) target = $region17
    $region16: #{tpu_custom_call.1} parent=1 // pred_region
      %40 = dma.done [#allocation3], 32
    $region17: #{tpu_custom_call.1} parent=1 // pred_fallthru
      _
    // Predicated region
    $region18: #{tpu_custom_call.1} parent=1 // pred_check
      _
    $region19: #{tpu_custom_call.1} parent=1 // pred_check_branch
      %42 = sbr.rel (0) target = $region21
    $region20: #{tpu_custom_call.1} parent=1 // pred_region
      %44 = dma.done [#allocation6], 2048
    $region21: #{tpu_custom_call.1} parent=1 // pred_fallthru
      _
    %v45 = vld [vmem:[#allocation2] sm:$0x3]
    %v46 = vld [vmem:[#allocation5] sm:$0xff]
    %v47 = vld [vmem:[#allocation5 + $0x8] sm:$0xff]
    %v48 = vld [vmem:[#allocation5 + $0x10] sm:$0xff]
    %v49 = vld [vmem:[#allocation5 + $0x18] sm:$0xff]
    %v50 = vld [vmem:[#allocation5 + $0x20] sm:$0xff]
    %v51 = vld [vmem:[#allocation5 + $0x28] sm:$0xff]
    %v52 = vld [vmem:[#allocation5 + $0x30] sm:$0xff]
    %v53 = vld [vmem:[#allocation5 + $0x38] sm:$0xff]
    %v54 = vld [vmem:[#allocation5 + $0x40] sm:$0xff]
    %v55 = vld [vmem:[#allocation5 + $0x48] sm:$0xff]
    %v56 = vld [vmem:[#allocation5 + $0x50] sm:$0xff]
    %v57 = vld [vmem:[#allocation5 + $0x58] sm:$0xff]
    %v58 = vld [vmem:[#allocation5 + $0x60] sm:$0xff]
    %v59 = vld [vmem:[#allocation5 + $0x68] sm:$0xff]
    %v60 = vld [vmem:[#allocation5 + $0x70] sm:$0xff]
    %v61 = vld [vmem:[#allocation5 + $0x78] sm:$0xff]
    %v62 = vld [vmem:[%s2] sm:$0x1]
    %v64 = vperm.slane %v62, 0
    %66 = vmatpush.xpose.msra.mxu0 %v61
    %67 = vmatpush.xpose.msra.mxu0 %v60
    %68 = vmatpush.xpose.msra.mxu0 %v59
    %69 = vmatpush.xpose.msra.mxu0 %v58
    %70 = vmatpush.xpose.msra.mxu0 %v57
    %71 = vmatpush.xpose.msra.mxu0 %v56
    %72 = vmatpush.xpose.msra.mxu0 %v55
    %73 = vmatpush.xpose.msra.mxu0 %v54
    %74 = vmatpush.xpose.msra.mxu0 %v53
    %75 = vmatpush.xpose.msra.mxu0 %v52
    %76 = vmatpush.xpose.msra.mxu0 %v51
    %77 = vmatpush.xpose.msra.mxu0 %v50
    %78 = vmatpush.xpose.msra.mxu0 %v49
    %79 = vmatpush.xpose.msra.mxu0 %v48
    %80 = vmatpush.xpose.msra.mxu0 %v47
    %81 = vmatpush.xpose.msra.mxu0 %v46
    %82 = vmatmul.f32.gmra.mxu0 %v45
    %v83 = vpop.f32.mrf.mxu0
    %v84 = vadd.f32 %v64, %v83
    %85 = vdwg.mxu0
    %v86 = vtanh.pop %v84
    %87 = vst [vmem:[#allocation7] sm:$0x3] %v86
    // Predicated region
    $region22: #{tpu_custom_call.1} parent=1 // pred_check
      _
    $region23: #{tpu_custom_call.1} parent=1 // pred_check_branch
      %89 = sbr.rel (0) target = $region25
    $region24: #{tpu_custom_call.1} parent=1 // pred_region
      %91 = vsyncadd [#allocation4], 0
      %s93 = sshll.u32 [#allocation7], 4
      %s94 = int_to_ptr.vmem [resolvable:$true] %s93
      %s95 = sshll.u32 %s3, 4
      %s96 = int_to_ptr.hbm [resolvable:$true] %s95
      %98 = dma.vmem_to_hbm [thread:$0]  %s94, 32, %s96, [#allocation4]
    $region25: #{tpu_custom_call.1} parent=1 // pred_fallthru
      _
    // Predicated region
    $region26: #{tpu_custom_call.1} parent=1 // pred_check
      _
    $region27: #{tpu_custom_call.1} parent=1 // pred_check_branch
      %100 = sbr.rel (0) target = $region29
    $region28: #{tpu_custom_call.1} parent=1 // pred_region
      %102 = dma.done [#allocation4], 32
    $region29: #{tpu_custom_call.1} parent=1 // pred_fallthru
      _
    %103 = vsyncpa [#allocation3], 1
    %104 = vsyncpa [#allocation6], 1
    %105 = vsyncpa [#allocation4], 1

</llo_original>
